<compile_context>
chip_gen: v5e
topology: v5e:2x2
jax: 0.10.0
libtpu: 0.0.40
codegen_flags: <defaults>
</compile_context>

<pallas_src>
import functools

import jax
import jax.numpy as jnp
import numpy as np
from jax.experimental import pallas as pl
from jax.experimental.pallas import tpu as pltpu


def _dino_loss_kernel(student_ref, teacher_ref, center_ref,
                      ploss_ref, pcenter_ref,
                      *, n_crops, full_batch, student_temp, teacher_temp):
    """One batch-tile of the DINO loss.

    student_ref: (n_crops, TB, D)   teacher_ref: (2, TB, D)   center_ref: (1, D)
    ploss_ref:   (1, 8, 128)        pcenter_ref: (1, 8, D)
    """
    inv_tt = jnp.float32(1.0 / teacher_temp)
    inv_st = jnp.float32(1.0 / student_temp)

    teacher = teacher_ref[...].astype(jnp.float32)            # (2, TB, D)
    center = center_ref[...].astype(jnp.float32)              # (1, D)

    # ---- teacher: center, temperature, softmax over the lane (feature) axis
    t_logits = (teacher - center[jnp.newaxis, :, :]) * inv_tt
    t_logits = t_logits - jnp.max(t_logits, axis=-1, keepdims=True)
    t_exp = jnp.exp(t_logits)
    t_den = jnp.sum(t_exp, axis=-1, keepdims=True)
    t_soft = t_exp * pl.reciprocal(t_den, approx=True)        # (2, TB, D)
    t_pair = t_soft[0] + t_soft[1]                            # (TB, D)

    # ---- student: streamed per-crop log-softmax
    def log_softmax_crop(s_idx):
        s = student_ref[s_idx].astype(jnp.float32) * inv_st   # (TB, D)
        s = s - jnp.max(s, axis=-1, keepdims=True)
        lse = jnp.log(jnp.sum(jnp.exp(s), axis=-1, keepdims=True))
        return s - lse

    # Crops 0 and 1 feed both the running sum and the diagonal (t_idx==s_idx)
    # terms that the factored form must subtract.
    ls0 = log_softmax_crop(0)
    ls1 = log_softmax_crop(1)
    diag = jnp.sum(t_soft[0] * ls0) + jnp.sum(t_soft[1] * ls1)
    s_sum = ls0 + ls1

    if n_crops > 2:
        def body(s_idx, acc):
            return acc + log_softmax_crop(s_idx)
        s_sum = jax.lax.fori_loop(2, n_crops, body, s_sum)

    cross = jnp.sum(t_pair * s_sum)
    n_terms = 2 * (n_crops - 1)
    # total += mean_b(sum_d(-t * log_softmax(s))) over pairs, / n_terms
    partial = (diag - cross) * jnp.float32(1.0 / (full_batch * n_terms))

    # Lane-dense, (8,128)-aligned partial outputs; wrapper reads sublane 0.
    ploss_ref[...] = jnp.broadcast_to(partial, ploss_ref.shape).astype(jnp.float32)

    # Raw teacher row-sum for the EMA center update (accumulated in f32).
    t_sum = jnp.sum(teacher, axis=(0, 1))                     # (D,)
    pcenter_ref[...] = jnp.broadcast_to(t_sum, pcenter_ref.shape).astype(jnp.float32)


def _choose_tile_batch(batch, n_crops, d, itemsize, budget_bytes=24 << 20):
    """Largest TB dividing batch (multiple of 8, or batch itself) whose
    double-buffered input + f32 working-set footprint fits the VMEM budget."""
    smallest_valid = batch
    for tb in range(batch, 0, -1):
        if batch % tb:
            continue
        if tb % 8 and tb != batch:
            continue
        est = 2 * itemsize * (n_crops + 2) * tb * d + 4 * 8 * tb * d
        if est <= budget_bytes:
            return tb
        smallest_valid = tb
    return smallest_valid


def _vmem_limit_bytes(n_crops, tb, d, itemsize):
    in_tile = itemsize * (n_crops + 2) * tb * d + 4 * d       # inputs (1 buf)
    work = 4 * 8 * tb * d                                     # ~8 f32 planes
    out_tile = 4 * 8 * (d + 128)
    est = 2 * in_tile + work + 2 * out_tile + (4 << 20)
    # Cap well below v7x's 64 MiB physical VMEM; also fine on v5e/v6e.
    return int(min(48 << 20, max(est, 16 << 20)))


class DinoLossPallas:
    def __init__(self, out_dim, n_crops, warmup_teacher_temp, teacher_temp,
                 warmup_teacher_epochs, epochs,
                 student_temp=0.1, center_momentum=0.9, tile_batch=None):
        self.n_crops = n_crops
        self.student_temp = student_temp
        self.center_momentum = center_momentum
        self.tile_batch = tile_batch
        self.center = jnp.zeros((1, out_dim), dtype=jnp.float32)
        self.teacher_temp_schedule = np.concatenate([
            np.linspace(warmup_teacher_temp, teacher_temp,
                        warmup_teacher_epochs),
            np.ones(epochs - warmup_teacher_epochs) * teacher_temp,
        ])

    def __call__(self, student_output, teacher_output, epoch):
        n_s, d = student_output.shape
        n_t, _ = teacher_output.shape
        batch = n_t // 2
        assert n_t == 2 * batch
        assert n_s == self.n_crops * batch
        assert self.n_crops >= 2
        teacher_temp = float(self.teacher_temp_schedule[epoch])

        itemsize = jnp.dtype(student_output.dtype).itemsize
        tb = self.tile_batch or _choose_tile_batch(batch, self.n_crops, d,
                                                   itemsize)
        assert batch % tb == 0 and (tb % 8 == 0 or tb == batch)
        num_tiles = batch // tb

        # (n_crops*B, D) -> (n_crops, B, D); (2*B, D) -> (2, B, D). These are
        # free reshapes; inputs keep their native dtype (cast per tile inside).
        student3 = student_output.reshape(self.n_crops, batch, d)
        teacher3 = teacher_output.reshape(2, batch, d)

        kernel = functools.partial(
            _dino_loss_kernel,
            n_crops=self.n_crops,
            full_batch=batch,
            student_temp=self.student_temp,
            teacher_temp=teacher_temp,
        )

        ploss, pcenter = pl.pallas_call(
            kernel,
            grid=(num_tiles,),
            out_shape=(
                jax.ShapeDtypeStruct((num_tiles, 8, 128), jnp.float32),
                jax.ShapeDtypeStruct((num_tiles, 8, d), jnp.float32),
            ),
            in_specs=[
                pl.BlockSpec((self.n_crops, tb, d), lambda i: (0, i, 0)),
                pl.BlockSpec((2, tb, d), lambda i: (0, i, 0)),
                pl.BlockSpec((1, d), lambda i: (0, 0)),
            ],
            out_specs=(
                pl.BlockSpec((1, 8, 128), lambda i: (i, 0, 0)),
                pl.BlockSpec((1, 8, d), lambda i: (i, 0, 0)),
            ),
            compiler_params=pltpu.CompilerParams(
                dimension_semantics=("parallel",),
                vmem_limit_bytes=_vmem_limit_bytes(self.n_crops, tb, d,
                                                   itemsize),
            ),
        )(student3, teacher3, self.center)

        # Tiny final reductions in the wrapper (keeps the grid axis parallel).
        loss = jnp.sum(ploss[:, 0, 0])
        batch_center = jnp.sum(pcenter[:, 0, :], axis=0, keepdims=True) / n_t

        # side-effect of forward in the PyTorch module: update center buffer
        # TODO(synk): dist.all_reduce / world_size > 1 has no single-device
        # equivalent here; single-device (world_size = 1) semantics implemented.
        self.center = (self.center_momentum * self.center
                       + (1.0 - self.center_momentum) * batch_center)
        return loss


def _reference(student_output, teacher_output, center, n_crops,
               student_temp, teacher_temp):
    s = student_output.astype(jnp.float32) / student_temp
    t = (teacher_output.astype(jnp.float32) - center) / teacher_temp
    t = jax.nn.softmax(t, axis=-1)
    batch = teacher_output.shape[0] // 2
    s_chunks = [s[i * batch:(i + 1) * batch] for i in range(n_crops)]
    t_chunks = [t[i * batch:(i + 1) * batch] for i in range(2)]
    total, n_terms = 0.0, 0
    for ti, tt in enumerate(t_chunks):
        for si, ss in enumerate(s_chunks):
            if ti == si:
                continue
            loss = jnp.sum(-tt * jax.nn.log_softmax(ss, axis=-1), axis=-1)
            total = total + jnp.mean(loss)
            n_terms += 1
    return total / n_terms


if __name__ == "__main__":
    out_dim = 128
    batch = 16
    n_crops = 4
    epoch = 1

    loss_mod = DinoLossPallas(
        out_dim=out_dim, n_crops=n_crops,
        warmup_teacher_temp=0.04, teacher_temp=0.07,
        warmup_teacher_epochs=3, epochs=10,
        student_temp=0.1, center_momentum=0.9,
        tile_batch=8,   # -> 2 batch tiles: exercises the pipelined/parallel grid
    )

    key = jax.random.PRNGKey(0)
    k1, k2 = jax.random.split(key)
    student_output = jax.random.normal(k1, (n_crops * batch, out_dim),
                                       dtype=jnp.float32)
    teacher_output = jax.random.normal(k2, (2 * batch, out_dim),
                                       dtype=jnp.float32)

    center_before = loss_mod.center
    loss = loss_mod(student_output, teacher_output, epoch)
    loss = jax.block_until_ready(loss)
    new_center = jax.block_until_ready(loss_mod.center)

    # correctness check against a plain-JAX reference
    teacher_temp = float(loss_mod.teacher_temp_schedule[epoch])
    ref_loss = _reference(student_output, teacher_output, center_before,
                          n_crops, loss_mod.student_temp, teacher_temp)
    ref_center = (0.9 * center_before
                  + 0.1 * jnp.mean(teacher_output, axis=0, keepdims=True))

    # approx=True reciprocal in the teacher softmax has ~2^-12 relative error,
    # hence the relaxed (still bug-catching) tolerance on the loss.
    assert np.allclose(np.asarray(loss), np.asarray(ref_loss),
                       rtol=3e-3, atol=3e-3), (loss, ref_loss)
    assert np.allclose(np.asarray(new_center), np.asarray(ref_center),
                       rtol=1e-5, atol=1e-5)

    print("KERNEL_OK")
</pallas_src>

<mosaic_0001>
module attributes {stable_mosaic.version = 11 : i64} {
  func.func @_dino_loss_kernel(%arg0: i32, %arg1: memref<4x8x128xf32, #tpu.memory_space<vmem>>, %arg2: memref<2x8x128xf32, #tpu.memory_space<vmem>>, %arg3: memref<1x128xf32, #tpu.memory_space<vmem>>, %arg4: memref<1x8x128xf32, #tpu.memory_space<vmem>>, %arg5: memref<1x8x128xf32, #tpu.memory_space<vmem>>) attributes {dimension_semantics = [#tpu.dimension_semantics<parallel>], iteration_bounds = array<i64: 2>, scalar_prefetch = 0 : i64, scratch_operands = 0 : i64, tpu.core_type = #tpu.core_type<tc>, window_params = [{transform_indices = @transform_0, window_bounds = array<i64: 4, 8, 128>}, {transform_indices = @transform_1, window_bounds = array<i64: 2, 8, 128>}, {pipeline_mode = #tpu.pipeline_mode<synchronous>, transform_indices = @transform_2, window_bounds = array<i64: 1, 128>}, {transform_indices = @transform_3, window_bounds = array<i64: 1, 8, 128>}, {transform_indices = @transform_4, window_bounds = array<i64: 1, 8, 128>}]} {
    %c0 = arith.constant 0 : index
    %c0_0 = arith.constant 0 : index
    %c0_1 = arith.constant 0 : index
    %0 = vector.load %arg2[%c0, %c0_0, %c0_1] : memref<2x8x128xf32, #tpu.memory_space<vmem>>, vector<2x8x128xf32>
    %c0_2 = arith.constant 0 : index
    %c0_3 = arith.constant 0 : index
    %1 = vector.load %arg3[%c0_2, %c0_3] : memref<1x128xf32, #tpu.memory_space<vmem>>, vector<1x128xf32>
    %2 = vector.shape_cast %1 : vector<1x128xf32> to vector<1x1x128xf32>
    %3 = vector.broadcast %2 : vector<1x1x128xf32> to vector<2x8x128xf32>
    %4 = arith.subf %0, %3 : vector<2x8x128xf32>
    %cst = arith.constant 18.181818 : f32
    %5 = vector.broadcast %cst : f32 to vector<2x8x128xf32>
    %6 = arith.mulf %4, %5 : vector<2x8x128xf32>
    %cst_4 = arith.constant dense<0xFF800000> : vector<2x8xf32>
    %7 = vector.multi_reduction <maximumf>, %6, %cst_4 [2] : vector<2x8x128xf32> to vector<2x8xf32>
    %8 = vector.shape_cast %7 : vector<2x8xf32> to vector<2x8x1xf32>
    %9 = vector.broadcast %8 : vector<2x8x1xf32> to vector<2x8x128xf32>
    %10 = arith.subf %6, %9 : vector<2x8x128xf32>
    %11 = math.exp %10 : vector<2x8x128xf32>
    %cst_5 = arith.constant dense<0.000000e+00> : vector<2x8xf32>
    %12 = vector.multi_reduction <add>, %11, %cst_5 [2] : vector<2x8x128xf32> to vector<2x8xf32>
    %13 = vector.shape_cast %12 : vector<2x8xf32> to vector<2x8x1xf32>
    %14 = tpu.reciprocal %13 {approx = true} : vector<2x8x1xf32> -> vector<2x8x1xf32>
    %15 = vector.broadcast %14 : vector<2x8x1xf32> to vector<2x8x128xf32>
    %16 = arith.mulf %11, %15 : vector<2x8x128xf32>
    %17 = vector.extract_strided_slice %16 {offsets = [0, 0, 0], sizes = [1, 8, 128], strides = [1, 1, 1]} : vector<2x8x128xf32> to vector<1x8x128xf32>
    %18 = vector.shape_cast %17 : vector<1x8x128xf32> to vector<8x128xf32>
    %19 = vector.extract_strided_slice %16 {offsets = [1, 0, 0], sizes = [1, 8, 128], strides = [1, 1, 1]} : vector<2x8x128xf32> to vector<1x8x128xf32>
    %20 = vector.shape_cast %19 : vector<1x8x128xf32> to vector<8x128xf32>
    %21 = arith.addf %18, %20 : vector<8x128xf32>
    %c0_6 = arith.constant 0 : index
    %c0_7 = arith.constant 0 : index
    %c0_8 = arith.constant 0 : index
    %22 = vector.load %arg1[%c0_6, %c0_7, %c0_8] : memref<4x8x128xf32, #tpu.memory_space<vmem>>, vector<1x8x128xf32>
    %23 = vector.shape_cast %22 : vector<1x8x128xf32> to vector<8x128xf32>
    %cst_9 = arith.constant 1.000000e+01 : f32
    %24 = vector.broadcast %cst_9 : f32 to vector<8x128xf32>
    %25 = arith.mulf %23, %24 : vector<8x128xf32>
    %cst_10 = arith.constant dense<0xFF800000> : vector<8xf32>
    %26 = vector.multi_reduction <maximumf>, %25, %cst_10 [1] : vector<8x128xf32> to vector<8xf32>
    %27 = vector.shape_cast %26 : vector<8xf32> to vector<8x1xf32>
    %28 = vector.broadcast %27 : vector<8x1xf32> to vector<8x128xf32>
    %29 = arith.subf %25, %28 : vector<8x128xf32>
    %30 = math.exp %29 : vector<8x128xf32>
    %cst_11 = arith.constant dense<0.000000e+00> : vector<8xf32>
    %31 = vector.multi_reduction <add>, %30, %cst_11 [1] : vector<8x128xf32> to vector<8xf32>
    %32 = vector.shape_cast %31 : vector<8xf32> to vector<8x1xf32>
    %33 = math.log %32 : vector<8x1xf32>
    %34 = vector.broadcast %33 : vector<8x1xf32> to vector<8x128xf32>
    %35 = arith.subf %29, %34 : vector<8x128xf32>
    %c1 = arith.constant 1 : index
    %c0_12 = arith.constant 0 : index
    %c0_13 = arith.constant 0 : index
    %36 = vector.load %arg1[%c1, %c0_12, %c0_13] : memref<4x8x128xf32, #tpu.memory_space<vmem>>, vector<1x8x128xf32>
    %37 = vector.shape_cast %36 : vector<1x8x128xf32> to vector<8x128xf32>
    %cst_14 = arith.constant 1.000000e+01 : f32
    %38 = vector.broadcast %cst_14 : f32 to vector<8x128xf32>
    %39 = arith.mulf %37, %38 : vector<8x128xf32>
    %cst_15 = arith.constant dense<0xFF800000> : vector<8xf32>
    %40 = vector.multi_reduction <maximumf>, %39, %cst_15 [1] : vector<8x128xf32> to vector<8xf32>
    %41 = vector.shape_cast %40 : vector<8xf32> to vector<8x1xf32>
    %42 = vector.broadcast %41 : vector<8x1xf32> to vector<8x128xf32>
    %43 = arith.subf %39, %42 : vector<8x128xf32>
    %44 = math.exp %43 : vector<8x128xf32>
    %cst_16 = arith.constant dense<0.000000e+00> : vector<8xf32>
    %45 = vector.multi_reduction <add>, %44, %cst_16 [1] : vector<8x128xf32> to vector<8xf32>
    %46 = vector.shape_cast %45 : vector<8xf32> to vector<8x1xf32>
    %47 = math.log %46 : vector<8x1xf32>
    %48 = vector.broadcast %47 : vector<8x1xf32> to vector<8x128xf32>
    %49 = arith.subf %43, %48 : vector<8x128xf32>
    %50 = vector.extract_strided_slice %16 {offsets = [0, 0, 0], sizes = [1, 8, 128], strides = [1, 1, 1]} : vector<2x8x128xf32> to vector<1x8x128xf32>
    %51 = vector.shape_cast %50 : vector<1x8x128xf32> to vector<8x128xf32>
    %52 = arith.mulf %51, %35 : vector<8x128xf32>
    %53 = vector.shape_cast %52 : vector<8x128xf32> to vector<1x8x128xf32>
    %cst_17 = arith.constant dense<0.000000e+00> : vector<1xf32>
    %54 = vector.multi_reduction <add>, %53, %cst_17 [1, 2] : vector<1x8x128xf32> to vector<1xf32>
    %55 = vector.shape_cast %54 : vector<1xf32> to vector<1x1x1xf32>
    %56 = vector.extract %55[0, 0, 0] : f32 from vector<1x1x1xf32>
    %57 = vector.extract_strided_slice %16 {offsets = [1, 0, 0], sizes = [1, 8, 128], strides = [1, 1, 1]} : vector<2x8x128xf32> to vector<1x8x128xf32>
    %58 = vector.shape_cast %57 : vector<1x8x128xf32> to vector<8x128xf32>
    %59 = arith.mulf %58, %49 : vector<8x128xf32>
    %60 = vector.shape_cast %59 : vector<8x128xf32> to vector<1x8x128xf32>
    %cst_18 = arith.constant dense<0.000000e+00> : vector<1xf32>
    %61 = vector.multi_reduction <add>, %60, %cst_18 [1, 2] : vector<1x8x128xf32> to vector<1xf32>
    %62 = vector.shape_cast %61 : vector<1xf32> to vector<1x1x1xf32>
    %63 = vector.extract %62[0, 0, 0] : f32 from vector<1x1x1xf32>
    %64 = arith.addf %56, %63 : f32
    %65 = arith.addf %35, %49 : vector<8x128xf32>
    %cst_19 = arith.constant 1.000000e+01 : f32
    %c2_i32 = arith.constant 2 : i32
    %c2_i32_20 = arith.constant 2 : i32
    %66 = arith.addi %c2_i32, %c2_i32_20 : i32
    %c1_i32 = arith.constant 1 : i32
    %67 = scf.for %arg6 = %c2_i32 to %66 step %c1_i32 iter_args(%arg7 = %65) -> (vector<8x128xf32>)  : i32 {
      %81 = arith.index_cast %arg6 : i32 to index
      %c0_31 = arith.constant 0 : index
      %c0_32 = arith.constant 0 : index
      %82 = vector.load %arg1[%81, %c0_31, %c0_32] : memref<4x8x128xf32, #tpu.memory_space<vmem>>, vector<1x8x128xf32>
      %83 = vector.shape_cast %82 : vector<1x8x128xf32> to vector<8x128xf32>
      %84 = vector.broadcast %cst_19 : f32 to vector<8x128xf32>
      %85 = arith.mulf %83, %84 : vector<8x128xf32>
      %cst_33 = arith.constant dense<0xFF800000> : vector<8xf32>
      %86 = vector.multi_reduction <maximumf>, %85, %cst_33 [1] : vector<8x128xf32> to vector<8xf32>
      %87 = vector.shape_cast %86 : vector<8xf32> to vector<8x1xf32>
      %88 = vector.broadcast %87 : vector<8x1xf32> to vector<8x128xf32>
      %89 = arith.subf %85, %88 : vector<8x128xf32>
      %90 = math.exp %89 : vector<8x128xf32>
      %cst_34 = arith.constant dense<0.000000e+00> : vector<8xf32>
      %91 = vector.multi_reduction <add>, %90, %cst_34 [1] : vector<8x128xf32> to vector<8xf32>
      %92 = vector.shape_cast %91 : vector<8xf32> to vector<8x1xf32>
      %93 = math.log %92 : vector<8x1xf32>
      %94 = vector.broadcast %93 : vector<8x1xf32> to vector<8x128xf32>
      %95 = arith.subf %89, %94 : vector<8x128xf32>
      %96 = arith.addf %arg7, %95 : vector<8x128xf32>
      scf.yield %96 : vector<8x128xf32>
    }
    %c2_i32_21 = arith.constant 2 : i32
    %68 = arith.mulf %21, %67 : vector<8x128xf32>
    %69 = vector.shape_cast %68 : vector<8x128xf32> to vector<1x8x128xf32>
    %cst_22 = arith.constant dense<0.000000e+00> : vector<1xf32>
    %70 = vector.multi_reduction <add>, %69, %cst_22 [1, 2] : vector<1x8x128xf32> to vector<1xf32>
    %71 = vector.shape_cast %70 : vector<1xf32> to vector<1x1x1xf32>
    %72 = vector.extract %71[0, 0, 0] : f32 from vector<1x1x1xf32>
    %73 = arith.subf %64, %72 : f32
    %cst_23 = arith.constant 0.010416667 : f32
    %74 = arith.mulf %73, %cst_23 : f32
    %75 = vector.broadcast %74 : f32 to vector<1x8x128xf32>
    %c0_24 = arith.constant 0 : index
    %c0_25 = arith.constant 0 : index
    %c0_26 = arith.constant 0 : index
    %76 = vector.load %arg4[%c0_24, %c0_25, %c0_26] : memref<1x8x128xf32, #tpu.memory_space<vmem>>, vector<1x8x128xf32>
    tpu.vector_store %arg4[%c0_24, %c0_25, %c0_26], %75 {strides = array<i32>} : memref<1x8x128xf32, #tpu.memory_space<vmem>>, vector<1x8x128xf32>,
    %cst_27 = arith.constant dense<0.000000e+00> : vector<128xf32>
    %77 = vector.multi_reduction <add>, %0, %cst_27 [0, 1] : vector<2x8x128xf32> to vector<128xf32>
    %78 = vector.shape_cast %77 : vector<128xf32> to vector<1x1x128xf32>
    %79 = vector.broadcast %78 : vector<1x1x128xf32> to vector<1x8x128xf32>
    %c0_28 = arith.constant 0 : index
    %c0_29 = arith.constant 0 : index
    %c0_30 = arith.constant 0 : index
    %80 = vector.load %arg5[%c0_28, %c0_29, %c0_30] : memref<1x8x128xf32, #tpu.memory_space<vmem>>, vector<1x8x128xf32>
    tpu.vector_store %arg5[%c0_28, %c0_29, %c0_30], %79 {strides = array<i32>} : memref<1x8x128xf32, #tpu.memory_space<vmem>>, vector<1x8x128xf32>,
    return
  }
  func.func @transform_0(%arg0: i32) -> (i32, i32, i32) {
    %c0_i32 = arith.constant 0 : i32
    %c0_i32_0 = arith.constant 0 : i32
    %c0_i32_1 = arith.constant 0 : i32
    return %c0_i32, %arg0, %c0_i32_0 : i32, i32, i32
  }
  func.func @transform_1(%arg0: i32) -> (i32, i32, i32) {
    %c0_i32 = arith.constant 0 : i32
    %c0_i32_0 = arith.constant 0 : i32
    %c0_i32_1 = arith.constant 0 : i32
    return %c0_i32, %arg0, %c0_i32_0 : i32, i32, i32
  }
  func.func @transform_2(%arg0: i32) -> (i32, i32) {
    %c0_i32 = arith.constant 0 : i32
    %c0_i32_0 = arith.constant 0 : i32
    %c0_i32_1 = arith.constant 0 : i32
    return %c0_i32, %c0_i32_0 : i32, i32
  }
  func.func @transform_3(%arg0: i32) -> (i32, i32, i32) {
    %c0_i32 = arith.constant 0 : i32
    %c0_i32_0 = arith.constant 0 : i32
    %c0_i32_1 = arith.constant 0 : i32
    return %arg0, %c0_i32, %c0_i32_0 : i32, i32, i32
  }
  func.func @transform_4(%arg0: i32) -> (i32, i32, i32) {
    %c0_i32 = arith.constant 0 : i32
    %c0_i32_0 = arith.constant 0 : i32
    %c0_i32_1 = arith.constant 0 : i32
    return %arg0, %c0_i32, %c0_i32_0 : i32, i32, i32
  }
}

</mosaic_0001>

<llo_original>
// kernel: tpu_custom_call.1
$region0: #{tpu_custom_call.1}
  #allocation0 [shape = 'u32[]', space=smem, size = 0x4, offset = 0x4, fixed_abs, tag = 'smem constant byte address 0x4 - core index']
  #allocation1 [shape = 'u32[72,128]{1,0:T(1,128)}', space=vmem, size = 0x9000, scoped, tag = 'internal scratch']
  %s0 = inlined_call_operand.hbm [shape: f32[4,16,128], index: 0, kind: input, shape index: {}]
  %s1 = inlined_call_operand.hbm [shape: f32[2,16,128], index: 1, kind: input, shape index: {}]
  %s2 = inlined_call_operand.vmem [shape: f32[1,128], index: 2, kind: input, shape index: {}]
  %s3 = inlined_call_operand.hbm [shape: f32[2,8,128], index: 3, kind: output, shape index: {0}]
  %s4 = inlined_call_operand.hbm [shape: f32[2,8,128], index: 4, kind: output, shape index: {1}]
  %5 = xla_tuple %s3, %s4
  %s6 = sld [smem:[#allocation0]]
  $region68: #{tpu_custom_call.1} parent=0
    _
  %s8 = ssub.s32 1, %s6
  %s9 = scalar_select 0, %s8, %s6
  $region1: #{tpu_custom_call.1} parent=0
    #allocation2 [shape = 'u8[32768]{0}', space=vmem, size = 0x8000, scoped, tag = 'input window, operand 0']
    #allocation3 [shape = 's32[2]{0}', space=sflag, size = 0x8, scoped, tag = 'scoped memory for tpu_custom_call.1']
    #allocation4 [shape = 's32[2]{0}', space=sflag, size = 0x8, scoped, tag = 'scoped memory for tpu_custom_call.1']
    #allocation5 [shape = 'u8[16384]{0}', space=vmem, size = 0x4000, scoped, tag = 'input window, operand 1']
    #allocation6 [shape = 's32[2]{0}', space=sflag, size = 0x8, scoped, tag = 'scoped memory for tpu_custom_call.1']
    #allocation7 [shape = 'u8[8192]{0}', space=vmem, size = 0x2000, scoped, tag = 'output window, operand 0']
    #allocation8 [shape = 'u8[8192]{0}', space=vmem, size = 0x2000, scoped, tag = 'output window, operand 1']
    #allocation9 [shape = 's32[2]{0}', space=sflag, size = 0x8, scoped, tag = 'scoped memory for tpu_custom_call.1']
    %10 = vsyncpa [#allocation3], 0
    %s11 = scalar_lea.sflag [#allocation3], 1
    %12 = vsyncpa %s11, 0
    %13 = vsyncpa [#allocation6], 0
    %s14 = scalar_lea.sflag [#allocation6], 1
    %15 = vsyncpa %s14, 0
    %16 = vsyncpa [#allocation4], 0
    %s17 = scalar_lea.sflag [#allocation4], 1
    %18 = vsyncpa %s17, 0
    %19 = vsyncpa [#allocation9], 0
    %s20 = scalar_lea.sflag [#allocation9], 1
    %21 = vsyncpa %s20, 0
    loop: start=0, step=1, limit=4
    $region2: #{tpu_custom_call.1} parent=1 // loop_pre_header
      _
    $region3: #{tpu_custom_call.1} parent=1 // loop_header
      %s23 = sphi 0, %s27
      %p24 = scmp.ge.s32.totalorder %s23, 4
      %s33 = sphi 0, %s35
      %s36 = sphi 0, %s33
      %s37 = sphi 0, %s36
      %s53 = sphi 0, %s37
      %s59 = sphi 0, %s61
      %s62 = sphi 0, %s59
      %s63 = sphi 0, %s62
      %s79 = sphi 0, %s63
      %s83 = sphi 0, %s83
      %s85 = sphi 0, %s83
      %s86 = sphi 0, %s85
      %s100 = sphi 0, %s86
      %s106 = sphi 0, %s108
      %s109 = sphi 0, %s106
      %s110 = sphi 0, %s109
      %s126 = sphi 0, %s110
      %s132 = sphi 0, %s134
      %s135 = sphi 0, %s132
      %s136 = sphi 0, %s135
      %s152 = sphi 0, %s136
    $region4: #{tpu_custom_call.1} parent=1 // loop_header_branch
      %26 = sbr.rel (%p24) target = $region8
    $region5: #{tpu_custom_call.1} parent=1 // loop_body
      %s28 = ssub.s32 %s23, 1
      %s29 = ssub.s32 %s23, 2
      %s30 = sadd.s32 %s23, 1
      %s31 = ssub.s32 %s23, %s30
      %p32 = scmp.eq.s32.totalorder %s31, 0
      %s34 = sadd.s32 %s33, 1
      %s35 = scalar_select %p32, %s33, %s34
      %p38 = pneg %p32
      %p39 = scmp.eq.s32.totalorder %s23, 1
      %p40 = por %p38, %p39
      %p41 = scmp.ne.s32.totalorder %s33, %s36
      %p42 = scmp.eq.s32.totalorder %s23, 0
      %p43 = por %p41, %p42
      %p44 = scmp.ne.s32.totalorder %s33, %s36
      %p45 = scmp.eq.s32.totalorder %s28, 1
      %p46 = por %p44, %p45
      %p47 = scmp.ne.s32.totalorder %s36, %s37
      %p48 = scmp.eq.s32.totalorder %s28, 0
      %p49 = por %p47, %p48
      %p50 = scmp.ne.s32.totalorder %s36, %s37
      %p51 = scmp.eq.s32.totalorder %s29, 1
      %p52 = por %p50, %p51
      %p54 = scmp.ne.s32.totalorder %s37, %s53
      %p55 = scmp.eq.s32.totalorder %s29, 0
      %p56 = por %p54, %p55
      %s57 = ssub.s32 %s23, %s30
      %p58 = scmp.eq.s32.totalorder %s57, 0
      %s60 = sadd.s32 %s59, 1
      %s61 = scalar_select %p58, %s59, %s60
      %p64 = pneg %p58
      %p65 = scmp.eq.s32.totalorder %s23, 1
      %p66 = por %p64, %p65
      %p67 = scmp.ne.s32.totalorder %s59, %s62
      %p68 = scmp.eq.s32.totalorder %s23, 0
      %p69 = por %p67, %p68
      %p70 = scmp.ne.s32.totalorder %s59, %s62
      %p71 = scmp.eq.s32.totalorder %s28, 1
      %p72 = por %p70, %p71
      %p73 = scmp.ne.s32.totalorder %s62, %s63
      %p74 = scmp.eq.s32.totalorder %s28, 0
      %p75 = por %p73, %p74
      %p76 = scmp.ne.s32.totalorder %s62, %s63
      %p77 = scmp.eq.s32.totalorder %s29, 1
      %p78 = por %p76, %p77
      %p80 = scmp.ne.s32.totalorder %s63, %s79
      %p81 = scmp.eq.s32.totalorder %s29, 0
      %p82 = por %p80, %p81
      %s84 = sadd.s32 %s83, 1
      %p87 = scmp.eq.s32.totalorder %s23, 1
      %p88 = scmp.ne.s32.totalorder %s83, %s85
      %p89 = scmp.eq.s32.totalorder %s23, 0
      %p90 = por %p88, %p89
      %p91 = scmp.ne.s32.totalorder %s83, %s85
      %p92 = scmp.eq.s32.totalorder %s28, 1
      %p93 = por %p91, %p92
      %p94 = scmp.ne.s32.totalorder %s85, %s86
      %p95 = scmp.eq.s32.totalorder %s28, 0
      %p96 = por %p94, %p95
      %p97 = scmp.ne.s32.totalorder %s85, %s86
      %p98 = scmp.eq.s32.totalorder %s29, 1
      %p99 = por %p97, %p98
      %p101 = scmp.ne.s32.totalorder %s86, %s100
      %p102 = scmp.eq.s32.totalorder %s29, 0
      %p103 = por %p101, %p102
      %s104 = ssub.s32 %s23, %s30
      %p105 = scmp.eq.s32.totalorder %s104, 0
      %s107 = sadd.s32 %s106, 1
      %s108 = scalar_select %p105, %s106, %s107
      %p111 = pneg %p105
      %p112 = scmp.eq.s32.totalorder %s23, 1
      %p113 = por %p111, %p112
      %p114 = scmp.ne.s32.totalorder %s106, %s109
      %p115 = scmp.eq.s32.totalorder %s23, 0
      %p116 = por %p114, %p115
      %p117 = scmp.ne.s32.totalorder %s106, %s109
      %p118 = scmp.eq.s32.totalorder %s28, 1
      %p119 = por %p117, %p118
      %p120 = scmp.ne.s32.totalorder %s109, %s110
      %p121 = scmp.eq.s32.totalorder %s28, 0
      %p122 = por %p120, %p121
      %p123 = scmp.ne.s32.totalorder %s109, %s110
      %p124 = scmp.eq.s32.totalorder %s29, 1
      %p125 = por %p123, %p124
      %p127 = scmp.ne.s32.totalorder %s110, %s126
      %p128 = scmp.eq.s32.totalorder %s29, 0
      %p129 = por %p127, %p128
      %s130 = ssub.s32 %s23, %s30
      %p131 = scmp.eq.s32.totalorder %s130, 0
      %s133 = sadd.s32 %s132, 1
      %s134 = scalar_select %p131, %s132, %s133
      %p137 = pneg %p131
      %p138 = scmp.eq.s32.totalorder %s23, 1
      %p139 = por %p137, %p138
      %p140 = scmp.ne.s32.totalorder %s132, %s135
      %p141 = scmp.eq.s32.totalorder %s23, 0
      %p142 = por %p140, %p141
      %p143 = scmp.ne.s32.totalorder %s132, %s135
      %p144 = scmp.eq.s32.totalorder %s28, 1
      %p145 = por %p143, %p144
      %p146 = scmp.ne.s32.totalorder %s135, %s136
      %p147 = scmp.eq.s32.totalorder %s28, 0
      %p148 = por %p146, %p147
      %p149 = scmp.ne.s32.totalorder %s135, %s136
      %p150 = scmp.eq.s32.totalorder %s29, 1
      %p151 = por %p149, %p150
      %p153 = scmp.ne.s32.totalorder %s136, %s152
      %p154 = scmp.eq.s32.totalorder %s29, 0
      %p155 = por %p153, %p154
      %p156 = scmp.le.s32.totalorder 1, %s23
      %p157 = scmp.lt.s32.totalorder %s23, 3
      %p158 = pnand %p156, %p157
      %p159 = pneg %p158
      // Predicated region
      $region9: #{tpu_custom_call.1} parent=5 // pred_check
        _
      $region10: #{tpu_custom_call.1} parent=5 // pred_check_branch
        %161 = sbr.rel (%p158) target = $region12
      $region11: #{tpu_custom_call.1} parent=5 // pred_region
        %s162 = ssub.s32 %s23, 1
        // Predicated region
        $region13: #{tpu_custom_call.1} parent=11 // pred_check
          %p163 = pneg %p96
        $region14: #{tpu_custom_call.1} parent=11 // pred_check_branch
          %165 = sbr.rel (%p163) target = $region16
        $region15: #{tpu_custom_call.1} parent=11 // pred_region
          _
        $region16: #{tpu_custom_call.1} parent=11 // pred_fallthru
          _
      $region12: #{tpu_custom_call.1} parent=5 // pred_fallthru
        _
      %p166 = scmp.lt.s32.totalorder %s23, 2
      // Predicated region
      $region17: #{tpu_custom_call.1} parent=5 // pred_check
        %p167 = pneg %p166
      $region18: #{tpu_custom_call.1} parent=5 // pred_check_branch
        %169 = sbr.rel (%p167) target = $region20
      $region19: #{tpu_custom_call.1} parent=5 // pred_region
        // Predicated region
        $region21: #{tpu_custom_call.1} parent=19 // pred_check
          %p170 = pneg %p43
        $region22: #{tpu_custom_call.1} parent=19 // pred_check_branch
          %172 = sbr.rel (%p170) target = $region24
        $region23: #{tpu_custom_call.1} parent=19 // pred_region
          %s173 = sand.u32 %s33, 1
          %s174 = scalar_lea.sflag [#allocation3], %s173
          %s175 = sand.u32 %s33, 1
          %s176 = smul.addr %s175, 32
          %s177 = scalar_lea.vmem [#allocation2], %s176
          %179 = vsyncadd %s174, 0
          %s180 = smul.addr %s23, 8
          %s181 = scalar_lea.hbm %s0, %s180
          %s182 = sshll.u32 %s181, 4
          %s183 = int_to_ptr.hbm [resolvable:$true] %s182
          %s184 = sshll.u32 %s177, 4
          %s185 = int_to_ptr.vmem [resolvable:$true] %s184
          %190 = dma.hbm_to_vmem [thread:$0]  %s183, 512, %s185, %s174, 256, 128, 8
        $region24: #{tpu_custom_call.1} parent=19 // pred_fallthru
          _
        // Predicated region
        $region25: #{tpu_custom_call.1} parent=19 // pred_check
          %p191 = pneg %p69
        $region26: #{tpu_custom_call.1} parent=19 // pred_check_branch
          %193 = sbr.rel (%p191) target = $region28
        $region27: #{tpu_custom_call.1} parent=19 // pred_region
          %s194 = sand.u32 %s59, 1
          %s195 = scalar_lea.sflag [#allocation6], %s194
          %s196 = sand.u32 %s59, 1
          %s197 = smul.addr %s196, 16
          %s198 = scalar_lea.vmem [#allocation5], %s197
          %200 = vsyncadd %s195, 0
          %s201 = smul.addr %s23, 8
          %s202 = scalar_lea.hbm %s1, %s201
          %s203 = sshll.u32 %s202, 4
          %s204 = int_to_ptr.hbm [resolvable:$true] %s203
          %s205 = sshll.u32 %s198, 4
          %s206 = int_to_ptr.vmem [resolvable:$true] %s205
          %211 = dma.hbm_to_vmem [thread:$0]  %s204, 256, %s206, %s195, 256, 128, 8
        $region28: #{tpu_custom_call.1} parent=19 // pred_fallthru
          _
      $region20: #{tpu_custom_call.1} parent=5 // pred_fallthru
        _
      %p212 = scmp.le.s32.totalorder 1, %s23
      %p213 = scmp.lt.s32.totalorder %s23, 3
      %p214 = pnand %p212, %p213
      %p215 = pneg %p214
      // Predicated region
      $region29: #{tpu_custom_call.1} parent=5 // pred_check
        _
      $region30: #{tpu_custom_call.1} parent=5 // pred_check_branch
        %217 = sbr.rel (%p214) target = $region32
      $region31: #{tpu_custom_call.1} parent=5 // pred_region
        %s218 = ssub.s32 %s23, 1
        %s219 = sand.u32 %s36, 1
        %s220 = scalar_lea.sflag [#allocation3], %s219
        %s221 = sand.u32 %s36, 1
        %s222 = smul.addr %s221, 32
        %s223 = scalar_lea.vmem [#allocation2], %s222
        // Predicated region
        $region33: #{tpu_custom_call.1} parent=31 // pred_check
          %p224 = pneg %p49
        $region34: #{tpu_custom_call.1} parent=31 // pred_check_branch
          %226 = sbr.rel (%p224) target = $region36
        $region35: #{tpu_custom_call.1} parent=31 // pred_region
          %228 = dma.done %s220, 512
        $region36: #{tpu_custom_call.1} parent=31 // pred_fallthru
          _
        %s229 = sand.u32 %s62, 1
        %s230 = scalar_lea.sflag [#allocation6], %s229
        %s231 = sand.u32 %s62, 1
        %s232 = smul.addr %s231, 16
        %s233 = scalar_lea.vmem [#allocation5], %s232
        // Predicated region
        $region37: #{tpu_custom_call.1} parent=31 // pred_check
          %p234 = pneg %p75
        $region38: #{tpu_custom_call.1} parent=31 // pred_check_branch
          %236 = sbr.rel (%p234) target = $region40
        $region39: #{tpu_custom_call.1} parent=31 // pred_region
          %238 = dma.done %s230, 256
        $region40: #{tpu_custom_call.1} parent=31 // pred_fallthru
          _
        %s239 = sand.u32 %s36, 1
        %s240 = scalar_lea.sflag [#allocation3], %s239
        %s241 = sand.u32 %s36, 1
        %s242 = smul.addr %s241, 32
        %s243 = scalar_lea.vmem [#allocation2], %s242
        %p244 = pneg %p49
        %p245 = pneg %p46
        %s246 = sand.u32 %s62, 1
        %s247 = scalar_lea.sflag [#allocation6], %s246
        %s248 = sand.u32 %s62, 1
        %s249 = smul.addr %s248, 16
        %s250 = scalar_lea.vmem [#allocation5], %s249
        %p251 = pneg %p75
        %p252 = pneg %p72
        %p253 = pneg %p96
        %p254 = pneg %p93
        %p255 = pneg %p122
        %p256 = pneg %p119
        %s257 = sand.u32 %s109, 1
        %s258 = scalar_lea.sflag [#allocation4], %s257
        %s259 = sand.u32 %s109, 1
        %s260 = smul.addr %s259, 8
        %s261 = scalar_lea.vmem [#allocation7], %s260
        %p262 = pneg %p148
        %p263 = pneg %p145
        %s264 = sand.u32 %s135, 1
        %s265 = scalar_lea.sflag [#allocation9], %s264
        %s266 = sand.u32 %s135, 1
        %s267 = smul.addr %s266, 8
        %s268 = scalar_lea.vmem [#allocation8], %s267
        %v269 = vld [vmem:[%s233] sm:$0xff]
        %v270 = vld [vmem:[%s233 + $0x8] sm:$0xff]
        %v271 = vld [vmem:[%s2] sm:$0x1]
        %v273 = vperm.slane %v271, 0
        %v275 = vsub.f32 %v269, %v273
        %v276 = vsub.f32 %v270, %v273
        %v277 = vmul.f32 %v275, 18.181818
        %v278 = vmul.f32 %v276, 18.181818
        %279 = vmax.xlane.f32.xlu0 %v277
        %v280 = vpop.xlane.xlu0 %279
        %281 = vmax.xlane.f32.xlu0 %v278
        %v282 = vpop.xlane.xlu0 %281
        %v283 = vsub.f32 %v277, %v280
        %v284 = vsub.f32 %v278, %v282
        %v285 = vmul.f32 %v283, 1.442695
        %v286 = vpow.pop %v285
        %v287 = vmul.f32 %v284, 1.442695
        %v288 = vpow.pop %v287
        %289 = vadd.xlane.f32.xlu0 %v286
        %v290 = vpop.xlane.xlu0 %289
        %291 = vadd.xlane.f32.xlu0 %v288
        %v292 = vpop.xlane.xlu0 %291
        %v293 = vrcp.pop %v290
        %v294 = vrcp.pop %v292
        %v295 = vmul.f32 %v286, %v293
        %v296 = vmul.f32 %v288, %v294
        %v297 = vadd.f32 %v295, %v296
        %v298 = vld [vmem:[%s223] sm:$0xff]
        %v299 = vmul.f32 %v298, 10.0
        %300 = vmax.xlane.f32.xlu0 %v299
        %v301 = vpop.xlane.xlu0 %300
        %v302 = vsub.f32 %v299, %v301
        %v303 = vmul.f32 %v302, 1.442695
        %v304 = vpow.pop %v303
        %305 = vadd.xlane.f32.xlu0 %v304
        %v306 = vpop.xlane.xlu0 %305
        %v307 = vlog2.pop %v306
        %v308 = vmul.f32 %v307, 0.6931472
        %v309 = vsub.f32 %v302, %v308
        %s310 = scalar_lea.vmem %s223, 8 [#allocation2]
        %v311 = vld [vmem:[%s310] sm:$0xff]
        %v312 = vmul.f32 %v311, 10.0
        %313 = vmax.xlane.f32.xlu0 %v312
        %v314 = vpop.xlane.xlu0 %313
        %v315 = vsub.f32 %v312, %v314
        %v316 = vmul.f32 %v315, 1.442695
        %v317 = vpow.pop %v316
        %318 = vadd.xlane.f32.xlu0 %v317
        %v319 = vpop.xlane.xlu0 %318
        %v320 = vlog2.pop %v319
        %v321 = vmul.f32 %v320, 0.6931472
        %v322 = vsub.f32 %v315, %v321
        %v323 = vmul.f32 %v295, %v309
        %324 = vadd.xlane.f32.xlu0 %v323
        %v325 = vpop.xlane.xlu0 %324
        %v326 = vrot.slane %v325, 4
        %v327 = vadd.f32 %v325, %v326
        %v328 = vrot.slane %v327, 2
        %v329 = vadd.f32 %v327, %v328
        %v330 = vrot.slane %v329, 1
        %v331 = vadd.f32 %v329, %v330
        %s332 = vtos %v331
        %v333 = vmul.f32 %v296, %v322
        %334 = vadd.xlane.f32.xlu0 %v333
        %v335 = vpop.xlane.xlu0 %334
        %v336 = vrot.slane %v335, 4
        %v337 = vadd.f32 %v335, %v336
        %v338 = vrot.slane %v337, 2
        %v339 = vadd.f32 %v337, %v338
        %v340 = vrot.slane %v339, 1
        %v341 = vadd.f32 %v339, %v340
        %s342 = vtos %v341
        %s343 = sadd.f32 %s332, %s342
        %v344 = vadd.f32 %v309, %v322
        loop: start=2, step=1, limit=4
        $region41: #{tpu_custom_call.1} parent=31 // loop_pre_header
          _
        $region42: #{tpu_custom_call.1} parent=31 // loop_header
          %s346 = sphi 2, %s350
          %p347 = scmp.ge.s32.totalorder %s346, 4
          %v351 = vphi %v344, %v366
        $region43: #{tpu_custom_call.1} parent=31 // loop_header_branch
          %349 = sbr.rel (%p347) target = $region47
        $region44: #{tpu_custom_call.1} parent=31 // loop_body
          %s352 = smul.u32 %s346, 8
          %s353 = scalar_lea.vmem %s223, %s352 [#allocation2]
          %v354 = vld [vmem:[%s353] sm:$0xff]
          %v355 = vmul.f32 %v354, 10.0
          %356 = vmax.xlane.f32.xlu0 %v355
          %v357 = vpop.xlane.xlu0 %356
          %v358 = vsub.f32 %v355, %v357
          %v359 = vmul.f32 %v358, 1.442695
          %v360 = vpow.pop %v359
          %361 = vadd.xlane.f32.xlu0 %v360
          %v362 = vpop.xlane.xlu0 %361
          %v363 = vlog2.pop %v362
          %v364 = vmul.f32 %v363, 0.6931472
          %v365 = vsub.f32 %v358, %v364
          %v366 = vadd.f32 %v351, %v365
        $region45: #{tpu_custom_call.1} parent=31 // loop_footer
          %s350 = sadd.s32 1, %s346
        $region46: #{tpu_custom_call.1} parent=31 // loop_footer_branch
          %345 = sbr.rel target = $region42
        $region47: #{tpu_custom_call.1} parent=31 // loop_exit
          _
        %v367 = vmul.f32 %v297, %v351
        %368 = vadd.xlane.f32.xlu0 %v367
        %v369 = vpop.xlane.xlu0 %368
        %v370 = vrot.slane %v369, 4
        %v371 = vadd.f32 %v369, %v370
        %v372 = vrot.slane %v371, 2
        %v373 = vadd.f32 %v371, %v372
        %v374 = vrot.slane %v373, 1
        %v375 = vadd.f32 %v373, %v374
        %s376 = vtos %v375
        %s377 = ssub.f32 %s343, %s376
        %s378 = smul.f32 %s377, 0.010416667
        %v379 = vstv %s378
        %380 = vst [vmem:[%s261] sm:$0xff] %v379
        %v381 = vadd.f32 %v269, %v270
        %v382 = vrot.slane %v381, 4
        %v383 = vadd.f32 %v381, %v382
        %v384 = vrot.slane %v383, 2
        %v385 = vadd.f32 %v383, %v384
        %v386 = vrot.slane %v385, 1
        %v387 = vadd.f32 %v385, %v386
        %388 = vst [vmem:[%s268] sm:$0xff] %v387
        %s389 = sand.u32 %s109, 1
        %s390 = scalar_lea.sflag [#allocation4], %s389
        %s391 = sand.u32 %s109, 1
        %s392 = smul.addr %s391, 8
        %s393 = scalar_lea.vmem [#allocation7], %s392
        %s394 = sand.u32 %s135, 1
        %s395 = scalar_lea.sflag [#allocation9], %s394
        %s396 = sand.u32 %s135, 1
        %s397 = smul.addr %s396, 8
        %s398 = scalar_lea.vmem [#allocation8], %s397
        // Predicated region
        $region48: #{tpu_custom_call.1} parent=31 // pred_check
          %p399 = pneg %p119
        $region49: #{tpu_custom_call.1} parent=31 // pred_check_branch
          %401 = sbr.rel (%p399) target = $region51
        $region50: #{tpu_custom_call.1} parent=31 // pred_region
          %403 = vsyncadd %s390, 0
          %s404 = smul.addr %s28, 8
          %s405 = scalar_lea.hbm %s3, %s404
          %s407 = sshll.u32 %s393, 4
          %s408 = int_to_ptr.vmem [resolvable:$true] %s407
          %s409 = sshll.u32 %s405, 4
          %s410 = int_to_ptr.hbm [resolvable:$true] %s409
          %412 = dma.vmem_to_hbm [thread:$0]  %s408, 128, %s410, %s390
        $region51: #{tpu_custom_call.1} parent=31 // pred_fallthru
          _
        // Predicated region
        $region52: #{tpu_custom_call.1} parent=31 // pred_check
          %p413 = pneg %p145
        $region53: #{tpu_custom_call.1} parent=31 // pred_check_branch
          %415 = sbr.rel (%p413) target = $region55
        $region54: #{tpu_custom_call.1} parent=31 // pred_region
          %417 = vsyncadd %s395, 0
          %s418 = smul.addr %s28, 8
          %s419 = scalar_lea.hbm %s4, %s418
          %s421 = sshll.u32 %s398, 4
          %s422 = int_to_ptr.vmem [resolvable:$true] %s421
          %s423 = sshll.u32 %s419, 4
          %s424 = int_to_ptr.hbm [resolvable:$true] %s423
          %426 = dma.vmem_to_hbm [thread:$0]  %s422, 128, %s424, %s395
        $region55: #{tpu_custom_call.1} parent=31 // pred_fallthru
          _
      $region32: #{tpu_custom_call.1} parent=5 // pred_fallthru
        _
      %p427 = scmp.le.s32.totalorder 2, %s23
      // Predicated region
      $region56: #{tpu_custom_call.1} parent=5 // pred_check
        %p428 = pneg %p427
      $region57: #{tpu_custom_call.1} parent=5 // pred_check_branch
        %430 = sbr.rel (%p428) target = $region59
      $region58: #{tpu_custom_call.1} parent=5 // pred_region
        %s431 = ssub.s32 %s23, 2
        // Predicated region
        $region60: #{tpu_custom_call.1} parent=58 // pred_check
          %p432 = pneg %p125
        $region61: #{tpu_custom_call.1} parent=58 // pred_check_branch
          %434 = sbr.rel (%p432) target = $region63
        $region62: #{tpu_custom_call.1} parent=58 // pred_region
          %s435 = sand.u32 %s110, 1
          %s436 = scalar_lea.sflag [#allocation4], %s435
          %s437 = sand.u32 %s110, 1
          %s438 = smul.addr %s437, 8
          %s439 = scalar_lea.vmem [#allocation7], %s438
          %441 = dma.done %s436, 128
        $region63: #{tpu_custom_call.1} parent=58 // pred_fallthru
          _
        // Predicated region
        $region64: #{tpu_custom_call.1} parent=58 // pred_check
          %p442 = pneg %p151
        $region65: #{tpu_custom_call.1} parent=58 // pred_check_branch
          %444 = sbr.rel (%p442) target = $region67
        $region66: #{tpu_custom_call.1} parent=58 // pred_region
          %s445 = sand.u32 %s136, 1
          %s446 = scalar_lea.sflag [#allocation9], %s445
          %s447 = sand.u32 %s136, 1
          %s448 = smul.addr %s447, 8
          %s449 = scalar_lea.vmem [#allocation8], %s448
          %451 = dma.done %s446, 128
        $region67: #{tpu_custom_call.1} parent=58 // pred_fallthru
          _
      $region59: #{tpu_custom_call.1} parent=5 // pred_fallthru
        _
    $region6: #{tpu_custom_call.1} parent=1 // loop_footer
      %s27 = sadd.s32 1, %s23
    $region7: #{tpu_custom_call.1} parent=1 // loop_footer_branch
      %22 = sbr.rel target = $region3
    $region8: #{tpu_custom_call.1} parent=1 // loop_exit
      _
    %452 = vsyncpa [#allocation3], 1
    %s453 = scalar_lea.sflag [#allocation3], 1
    %454 = vsyncpa %s453, 1
    %455 = vsyncpa [#allocation6], 1
    %s456 = scalar_lea.sflag [#allocation6], 1
    %457 = vsyncpa %s456, 1
    %458 = vsyncpa [#allocation4], 1
    %s459 = scalar_lea.sflag [#allocation4], 1
    %460 = vsyncpa %s459, 1
    %461 = vsyncpa [#allocation9], 1
    %s462 = scalar_lea.sflag [#allocation9], 1
    %463 = vsyncpa %s462, 1

</llo_original>
